<compile_context>
chip_gen: v7x
topology: tpu7x:2x2x1
jax: 0.10.0
libtpu: 0.0.40
codegen_flags: <defaults>
</compile_context>

<pallas_src>
import math
from functools import partial

import jax
import jax.numpy as jnp
from jax.experimental import pallas as pl
from jax.experimental.pallas import tpu as pltpu

NEG_SLOPE = 0.01   # nn.LeakyReLU() default negative_slope
LANE = 128         # TPU vreg lane width
TB_CAP = 512       # max rows per batch tile


def _round_up(n, m):
    return ((n + m - 1) // m) * m


def _cdiv(a, b):
    return (a + b - 1) // b


def _leaky_relu(v):
    return jnp.where(v >= 0, v, NEG_SLOPE * v)


def _vmem_capacity_bytes():
    """Per-core VMEM capacity; conservative 64 MiB (v7x) fallback."""
    try:
        info = pltpu.get_tpu_info()
        for name in ("vmem_capacity_bytes", "vmem_size_bytes", "vmem_bytes"):
            cap = getattr(info, name, None)
            if cap:
                return int(cap)
    except Exception:
        pass
    return 64 * 1024 * 1024


def classifier_kernel(x_ref, w1_ref, b1_ref, w2_ref, b2_ref, w3_ref, b3_ref,
                      o_ref, *, nsub):
    """One batch tile through the whole 3-layer MLP (everything resident in VMEM).

    The tile is processed in `nsub` independent row sub-blocks so the MXU work of
    sub-block j+1 can overlap the VPU epilogue (bias + LeakyReLU + cast) of
    sub-block j.  Weights are bf16, dots accumulate in f32 on the MXU.
    """
    tb = x_ref.shape[0]
    sub = tb // nsub

    w1 = w1_ref[...]
    b1 = b1_ref[...]
    w2 = w2_ref[...]
    b2 = b2_ref[...]
    w3 = w3_ref[...]
    b3 = b3_ref[...]

    for j in range(nsub):                       # static unroll -> LLO interleaves
        rows = pl.ds(j * sub, sub)
        xb = x_ref[rows, :].astype(jnp.bfloat16)

        # Layer 1: Linear + LeakyReLU (Dropout -> identity in eval mode)
        h1 = jnp.dot(xb, w1, preferred_element_type=jnp.float32) + b1
        h1 = _leaky_relu(h1)

        # Layer 2: Linear + LeakyReLU (Dropout -> identity in eval mode)
        h2 = jnp.dot(h1.astype(jnp.bfloat16), w2,
                     preferred_element_type=jnp.float32) + b2
        h2 = _leaky_relu(h2)

        # Layer 3: Linear + LeakyReLU (lane-dense padded output slab)
        h3 = jnp.dot(h2.astype(jnp.bfloat16), w3,
                     preferred_element_type=jnp.float32) + b3
        h3 = _leaky_relu(h3)

        o_ref[rows, :] = h3.astype(o_ref.dtype)


def classifier_forward(x, kparams, out_dtype=jnp.bfloat16):
    """x: (B, in_dim) f32 or bf16.  kparams: padded/bf16 params from
    pack_params_for_kernel.  Returns the padded (Bp, ncp) output slab; the
    consumer slices [:B, :n_classes]."""
    B, in_dim = x.shape
    w1, b1 = kparams["w1"], kparams["b1"]
    w2, b2 = kparams["w2"], kparams["b2"]
    w3, b3 = kparams["w3"], kparams["b3"]
    kp = w1.shape[0]                                  # padded layer-1 K (×128)
    h1p, h2p, ncp = w1.shape[1], w2.shape[1], w3.shape[1]

    x_bytes = jnp.dtype(x.dtype).itemsize
    o_bytes = jnp.dtype(out_dtype).itemsize

    # Resident (single-buffered) weight footprint + streaming bytes per batch row.
    weight_bytes = (w1.size + w2.size + w3.size) * 2 + (b1.size + b2.size + b3.size) * 4
    per_row = 2 * kp * x_bytes + 2 * ncp * o_bytes + (h1p + h2p) * 4

    cap = _vmem_capacity_bytes()
    budget = int(0.75 * cap) - weight_bytes
    if budget > per_row * 8:
        tb_max = max(8, min(TB_CAP, (budget // per_row) // 8 * 8))
    else:
        tb_max = 8   # weights barely fit / don't fit -- see K-tiled-fallback TODO above

    # Balanced tiling: minimize batch padding; >=2 grid steps when splittable so
    # the "parallel" batch axis actually uses both v7x TensorCores.
    steps = _cdiv(B, tb_max)
    if B >= 16:
        steps = max(steps, 2)
    per = _cdiv(B, steps)
    row_align = 16 if per >= 16 else 8                # bf16-friendly sublane packing
    TB = _round_up(per, row_align)
    Bp = _round_up(B, TB)
    grid = (Bp // TB,)
    nsub = 2 if (TB >= 32 and TB % 16 == 0) else 1    # in-kernel MXU/VPU overlap

    if (Bp, kp) != (B, in_dim):
        x = jnp.pad(x, ((0, Bp - B), (0, kp - in_dim)))

    # Advisory cost estimate for XLA's scheduler.
    flops = 2 * Bp * (kp * h1p + h1p * h2p + h2p * ncp)
    bytes_accessed = Bp * kp * x_bytes + Bp * ncp * o_bytes + weight_bytes
    cost = pl.CostEstimate(flops=flops, transcendentals=0, bytes_accessed=bytes_accessed)

    # VMEM budget: single-buffered weights + double-buffered x/out tiles +
    # intermediates, capped at ~82% of this generation's physical VMEM.
    tile_bytes = TB * per_row
    vmem_limit = min(int(0.82 * cap),
                     max(32 * 1024 * 1024, 2 * (weight_bytes + tile_bytes)))

    kernel = partial(classifier_kernel, nsub=nsub)

    def run(single_buffer_weights):
        if single_buffer_weights:
            resident = lambda shape: pl.BlockSpec(shape, lambda i: (0, 0),
                                                  pipeline_mode=pl.Buffered(1))
        else:
            resident = lambda shape: pl.BlockSpec(shape, lambda i: (0, 0))
        return pl.pallas_call(
            kernel,
            out_shape=jax.ShapeDtypeStruct((Bp, ncp), out_dtype),
            grid=grid,
            in_specs=[
                pl.BlockSpec((TB, kp), lambda i: (i, 0)),    # x: tiled over batch
                resident(w1.shape), resident(b1.shape),      # weights/biases resident
                resident(w2.shape), resident(b2.shape),
                resident(w3.shape), resident(b3.shape),
            ],
            out_specs=pl.BlockSpec((TB, ncp), lambda i: (i, 0)),
            compiler_params=pltpu.CompilerParams(
                dimension_semantics=("parallel",),           # megacore split on v7x
                vmem_limit_bytes=vmem_limit,
            ),
            cost_estimate=cost,
        )(x, w1, b1, w2, b2, w3, b3)

    try:
        return run(True)
    except Exception:
        # Fallback for stacks where single-buffered (Buffered(1)) inputs aren't accepted.
        return run(False)


def init_classifier_params(key, in_dim, n_classes):
    """Kaiming-normal weights (fan_in, gain=sqrt(2)) + bias=0.01, matching
    `init_weights` in the PyTorch module.  Stored as (in_features, out_features)
    so the kernel computes y = x @ W + b."""
    dims = [(in_dim, in_dim // 2), (in_dim // 2, in_dim // 4), (in_dim // 4, n_classes)]
    params = {}
    keys = jax.random.split(key, len(dims))
    for i, ((fan_in, fan_out), k) in enumerate(zip(dims, keys), start=1):
        std = math.sqrt(2.0) / math.sqrt(fan_in)  # kaiming_normal_ default
        params[f"w{i}"] = std * jax.random.normal(k, (fan_in, fan_out), dtype=jnp.float32)
        params[f"b{i}"] = jnp.full((1, fan_out), 0.01, dtype=jnp.float32)
    return params


def pack_params_for_kernel(params):
    """Zero-pad every feature dim (including layer-1 K / in_dim) up to multiples of
    128 and cast weights to bf16 for the MXU.  Padded bias lanes are 0.0 (NOT 0.01)
    so padded activations are exactly 0 after bias+LeakyReLU and never contaminate
    the next matmul -> padding is numerically exact."""
    packed = {}
    for i in (1, 2, 3):
        w, b = params[f"w{i}"], params[f"b{i}"]
        fan_in, fan_out = w.shape
        fi_p = _round_up(fan_in, LANE)
        fo_p = _round_up(fan_out, LANE)
        wp = jnp.zeros((fi_p, fo_p), jnp.float32).at[:fan_in, :fan_out].set(w)
        bp = jnp.zeros((1, fo_p), jnp.float32).at[:, :fan_out].set(b)
        packed[f"w{i}"] = wp.astype(jnp.bfloat16)
        packed[f"b{i}"] = bp
    return packed


def reference_forward(x, packed):
    """Plain-JAX reference emulating the kernel numerics (bf16 operands, f32 acc)."""
    kp = packed["w1"].shape[0]
    if x.shape[1] < kp:
        x = jnp.pad(x, ((0, 0), (0, kp - x.shape[1])))

    def layer(h, w, b):
        y = jnp.dot(h.astype(jnp.bfloat16), w, preferred_element_type=jnp.float32) + b
        return _leaky_relu(y)

    h = layer(x, packed["w1"], packed["b1"])
    h = layer(h, packed["w2"], packed["b2"])
    return layer(h, packed["w3"], packed["b3"])


if __name__ == "__main__":
    in_dim = 32
    n_classes = 4
    batch = 8

    key = jax.random.PRNGKey(0)
    k_x, k_p = jax.random.split(key)
    x = jax.random.normal(k_x, (batch, in_dim), dtype=jnp.float32)

    params = init_classifier_params(k_p, in_dim, n_classes)
    kparams = pack_params_for_kernel(params)

    out_slab = classifier_forward(x, kparams)              # padded bf16 slab
    out_slab = jax.block_until_ready(out_slab)
    # Consumer-side slice (folded out of the wrapper per perf review).
    out = out_slab[:batch, :n_classes].astype(jnp.float32)
    assert out.shape == (batch, n_classes)

    # Check against a reference using the same bf16-operand numerics (bf16 writeback tol).
    ref = reference_forward(x, kparams)[:batch, :n_classes]
    assert jnp.allclose(out, ref, atol=3e-2, rtol=3e-2), float(jnp.max(jnp.abs(out - ref)))

    # Loose sanity check against pure-f32 math (PyTorch-equivalent forward).
    h = _leaky_relu(x @ params["w1"] + params["b1"])
    h = _leaky_relu(h @ params["w2"] + params["b2"])
    ref_f32 = _leaky_relu(h @ params["w3"] + params["b3"])
    assert jnp.allclose(out, ref_f32, atol=1e-1, rtol=1e-1)

    print("KERNEL_OK")
</pallas_src>

<mosaic_0001>
module attributes {stable_mosaic.version = 11 : i64} {
  func.func @classifier_kernel(%arg0: i32, %arg1: memref<8x128xf32, #tpu.memory_space<vmem>>, %arg2: memref<128x128xbf16, #tpu.memory_space<vmem>>, %arg3: memref<1x128xf32, #tpu.memory_space<vmem>>, %arg4: memref<128x128xbf16, #tpu.memory_space<vmem>>, %arg5: memref<1x128xf32, #tpu.memory_space<vmem>>, %arg6: memref<128x128xbf16, #tpu.memory_space<vmem>>, %arg7: memref<1x128xf32, #tpu.memory_space<vmem>>, %arg8: memref<8x128xbf16, #tpu.memory_space<vmem>>) attributes {dimension_semantics = [#tpu.dimension_semantics<parallel>], iteration_bounds = array<i64: 1>, scalar_prefetch = 0 : i64, scratch_operands = 0 : i64, tpu.core_type = #tpu.core_type<tc>, window_params = [{transform_indices = @transform_0, window_bounds = array<i64: 8, 128>}, {pipeline_mode = #tpu.pipeline_mode<synchronous>, transform_indices = @transform_1, window_bounds = array<i64: 128, 128>}, {pipeline_mode = #tpu.pipeline_mode<synchronous>, transform_indices = @transform_2, window_bounds = array<i64: 1, 128>}, {pipeline_mode = #tpu.pipeline_mode<synchronous>, transform_indices = @transform_3, window_bounds = array<i64: 128, 128>}, {pipeline_mode = #tpu.pipeline_mode<synchronous>, transform_indices = @transform_4, window_bounds = array<i64: 1, 128>}, {pipeline_mode = #tpu.pipeline_mode<synchronous>, transform_indices = @transform_5, window_bounds = array<i64: 128, 128>}, {pipeline_mode = #tpu.pipeline_mode<synchronous>, transform_indices = @transform_6, window_bounds = array<i64: 1, 128>}, {transform_indices = @transform_7, window_bounds = array<i64: 8, 128>}]} {
    %c0 = arith.constant 0 : index
    %c0_0 = arith.constant 0 : index
    %0 = vector.load %arg2[%c0, %c0_0] : memref<128x128xbf16, #tpu.memory_space<vmem>>, vector<128x128xbf16>
    %c0_1 = arith.constant 0 : index
    %c0_2 = arith.constant 0 : index
    %1 = vector.load %arg3[%c0_1, %c0_2] : memref<1x128xf32, #tpu.memory_space<vmem>>, vector<1x128xf32>
    %c0_3 = arith.constant 0 : index
    %c0_4 = arith.constant 0 : index
    %2 = vector.load %arg4[%c0_3, %c0_4] : memref<128x128xbf16, #tpu.memory_space<vmem>>, vector<128x128xbf16>
    %c0_5 = arith.constant 0 : index
    %c0_6 = arith.constant 0 : index
    %3 = vector.load %arg5[%c0_5, %c0_6] : memref<1x128xf32, #tpu.memory_space<vmem>>, vector<1x128xf32>
    %c0_7 = arith.constant 0 : index
    %c0_8 = arith.constant 0 : index
    %4 = vector.load %arg6[%c0_7, %c0_8] : memref<128x128xbf16, #tpu.memory_space<vmem>>, vector<128x128xbf16>
    %c0_9 = arith.constant 0 : index
    %c0_10 = arith.constant 0 : index
    %5 = vector.load %arg7[%c0_9, %c0_10] : memref<1x128xf32, #tpu.memory_space<vmem>>, vector<1x128xf32>
    %c0_11 = arith.constant 0 : index
    %c0_12 = arith.constant 0 : index
    %6 = vector.load %arg1[%c0_11, %c0_12] : memref<8x128xf32, #tpu.memory_space<vmem>>, vector<8x128xf32>
    %7 = arith.truncf %6 : vector<8x128xf32> to vector<8x128xbf16>
    %cst = arith.constant dense<0.000000e+00> : vector<8x128xf32>
    %8 = tpu.matmul %7, %0, %cst {dimension_numbers = #tpu.dot_dimension_numbers<[1], [0], [0], [1], [0, 0, 1, 1], [], []>} : vector<8x128xbf16>, vector<128x128xbf16>, vector<8x128xf32> -> vector<8x128xf32>
    %9 = vector.broadcast %1 : vector<1x128xf32> to vector<8x128xf32>
    %10 = arith.addf %8, %9 : vector<8x128xf32>
    %cst_13 = arith.constant 0.000000e+00 : f32
    %11 = vector.broadcast %cst_13 : f32 to vector<8x128xf32>
    %12 = arith.cmpf oge, %10, %11 : vector<8x128xf32>
    %cst_14 = arith.constant 0.00999999977 : f32
    %13 = vector.broadcast %cst_14 : f32 to vector<8x128xf32>
    %14 = arith.mulf %13, %10 : vector<8x128xf32>
    %15 = arith.select %12, %10, %14 : vector<8x128xi1>, vector<8x128xf32>
    %16 = arith.truncf %15 : vector<8x128xf32> to vector<8x128xbf16>
    %cst_15 = arith.constant dense<0.000000e+00> : vector<8x128xf32>
    %17 = tpu.matmul %16, %2, %cst_15 {dimension_numbers = #tpu.dot_dimension_numbers<[1], [0], [0], [1], [0, 0, 1, 1], [], []>} : vector<8x128xbf16>, vector<128x128xbf16>, vector<8x128xf32> -> vector<8x128xf32>
    %18 = vector.broadcast %3 : vector<1x128xf32> to vector<8x128xf32>
    %19 = arith.addf %17, %18 : vector<8x128xf32>
    %cst_16 = arith.constant 0.000000e+00 : f32
    %20 = vector.broadcast %cst_16 : f32 to vector<8x128xf32>
    %21 = arith.cmpf oge, %19, %20 : vector<8x128xf32>
    %cst_17 = arith.constant 0.00999999977 : f32
    %22 = vector.broadcast %cst_17 : f32 to vector<8x128xf32>
    %23 = arith.mulf %22, %19 : vector<8x128xf32>
    %24 = arith.select %21, %19, %23 : vector<8x128xi1>, vector<8x128xf32>
    %25 = arith.truncf %24 : vector<8x128xf32> to vector<8x128xbf16>
    %cst_18 = arith.constant dense<0.000000e+00> : vector<8x128xf32>
    %26 = tpu.matmul %25, %4, %cst_18 {dimension_numbers = #tpu.dot_dimension_numbers<[1], [0], [0], [1], [0, 0, 1, 1], [], []>} : vector<8x128xbf16>, vector<128x128xbf16>, vector<8x128xf32> -> vector<8x128xf32>
    %27 = vector.broadcast %5 : vector<1x128xf32> to vector<8x128xf32>
    %28 = arith.addf %26, %27 : vector<8x128xf32>
    %cst_19 = arith.constant 0.000000e+00 : f32
    %29 = vector.broadcast %cst_19 : f32 to vector<8x128xf32>
    %30 = arith.cmpf oge, %28, %29 : vector<8x128xf32>
    %cst_20 = arith.constant 0.00999999977 : f32
    %31 = vector.broadcast %cst_20 : f32 to vector<8x128xf32>
    %32 = arith.mulf %31, %28 : vector<8x128xf32>
    %33 = arith.select %30, %28, %32 : vector<8x128xi1>, vector<8x128xf32>
    %34 = arith.truncf %33 : vector<8x128xf32> to vector<8x128xbf16>
    %c0_21 = arith.constant 0 : index
    %c0_22 = arith.constant 0 : index
    %35 = vector.load %arg8[%c0_21, %c0_22] : memref<8x128xbf16, #tpu.memory_space<vmem>>, vector<8x128xbf16>
    tpu.vector_store %arg8[%c0_21, %c0_22], %34 {strides = array<i32>} : memref<8x128xbf16, #tpu.memory_space<vmem>>, vector<8x128xbf16>,
    return
  }
  func.func @transform_0(%arg0: i32) -> (i32, i32) {
    %c0_i32 = arith.constant 0 : i32
    %c0_i32_0 = arith.constant 0 : i32
    return %arg0, %c0_i32 : i32, i32
  }
  func.func @transform_1(%arg0: i32) -> (i32, i32) {
    %c0_i32 = arith.constant 0 : i32
    %c0_i32_0 = arith.constant 0 : i32
    %c0_i32_1 = arith.constant 0 : i32
    return %c0_i32, %c0_i32_0 : i32, i32
  }
  func.func @transform_2(%arg0: i32) -> (i32, i32) {
    %c0_i32 = arith.constant 0 : i32
    %c0_i32_0 = arith.constant 0 : i32
    %c0_i32_1 = arith.constant 0 : i32
    return %c0_i32, %c0_i32_0 : i32, i32
  }
  func.func @transform_3(%arg0: i32) -> (i32, i32) {
    %c0_i32 = arith.constant 0 : i32
    %c0_i32_0 = arith.constant 0 : i32
    %c0_i32_1 = arith.constant 0 : i32
    return %c0_i32, %c0_i32_0 : i32, i32
  }
  func.func @transform_4(%arg0: i32) -> (i32, i32) {
    %c0_i32 = arith.constant 0 : i32
    %c0_i32_0 = arith.constant 0 : i32
    %c0_i32_1 = arith.constant 0 : i32
    return %c0_i32, %c0_i32_0 : i32, i32
  }
  func.func @transform_5(%arg0: i32) -> (i32, i32) {
    %c0_i32 = arith.constant 0 : i32
    %c0_i32_0 = arith.constant 0 : i32
    %c0_i32_1 = arith.constant 0 : i32
    return %c0_i32, %c0_i32_0 : i32, i32
  }
  func.func @transform_6(%arg0: i32) -> (i32, i32) {
    %c0_i32 = arith.constant 0 : i32
    %c0_i32_0 = arith.constant 0 : i32
    %c0_i32_1 = arith.constant 0 : i32
    return %c0_i32, %c0_i32_0 : i32, i32
  }
  func.func @transform_7(%arg0: i32) -> (i32, i32) {
    %c0_i32 = arith.constant 0 : i32
    %c0_i32_0 = arith.constant 0 : i32
    return %arg0, %c0_i32 : i32, i32
  }
}

module attributes {stable_mosaic.version = 11 : i64} {
  func.func @classifier_kernel(%arg0: i32, %arg1: memref<8x128xf32, #tpu.memory_space<vmem>>, %arg2: memref<128x128xbf16, #tpu.memory_space<vmem>>, %arg3: memref<1x128xf32, #tpu.memory_space<vmem>>, %arg4: memref<128x128xbf16, #tpu.memory_space<vmem>>, %arg5: memref<1x128xf32, #tpu.memory_space<vmem>>, %arg6: memref<128x128xbf16, #tpu.memory_space<vmem>>, %arg7: memref<1x128xf32, #tpu.memory_space<vmem>>, %arg8: memref<8x128xbf16, #tpu.memory_space<vmem>>) attributes {dimension_semantics = [#tpu.dimension_semantics<parallel>], iteration_bounds = array<i64: 1>, scalar_prefetch = 0 : i64, scratch_operands = 0 : i64, tpu.core_type = #tpu.core_type<tc>, window_params = [{transform_indices = @transform_0, window_bounds = array<i64: 8, 128>}, {pipeline_mode = #tpu.pipeline_mode<synchronous>, transform_indices = @transform_1, window_bounds = array<i64: 128, 128>}, {pipeline_mode = #tpu.pipeline_mode<synchronous>, transform_indices = @transform_2, window_bounds = array<i64: 1, 128>}, {pipeline_mode = #tpu.pipeline_mode<synchronous>, transform_indices = @transform_3, window_bounds = array<i64: 128, 128>}, {pipeline_mode = #tpu.pipeline_mode<synchronous>, transform_indices = @transform_4, window_bounds = array<i64: 1, 128>}, {pipeline_mode = #tpu.pipeline_mode<synchronous>, transform_indices = @transform_5, window_bounds = array<i64: 128, 128>}, {pipeline_mode = #tpu.pipeline_mode<synchronous>, transform_indices = @transform_6, window_bounds = array<i64: 1, 128>}, {transform_indices = @transform_7, window_bounds = array<i64: 8, 128>}]} {
    %c0 = arith.constant 0 : index
    %c0_0 = arith.constant 0 : index
    %0 = vector.load %arg2[%c0, %c0_0] : memref<128x128xbf16, #tpu.memory_space<vmem>>, vector<128x128xbf16>
    %c0_1 = arith.constant 0 : index
    %c0_2 = arith.constant 0 : index
    %1 = vector.load %arg3[%c0_1, %c0_2] : memref<1x128xf32, #tpu.memory_space<vmem>>, vector<1x128xf32>
    %c0_3 = arith.constant 0 : index
    %c0_4 = arith.constant 0 : index
    %2 = vector.load %arg4[%c0_3, %c0_4] : memref<128x128xbf16, #tpu.memory_space<vmem>>, vector<128x128xbf16>
    %c0_5 = arith.constant 0 : index
    %c0_6 = arith.constant 0 : index
    %3 = vector.load %arg5[%c0_5, %c0_6] : memref<1x128xf32, #tpu.memory_space<vmem>>, vector<1x128xf32>
    %c0_7 = arith.constant 0 : index
    %c0_8 = arith.constant 0 : index
    %4 = vector.load %arg6[%c0_7, %c0_8] : memref<128x128xbf16, #tpu.memory_space<vmem>>, vector<128x128xbf16>
    %c0_9 = arith.constant 0 : index
    %c0_10 = arith.constant 0 : index
    %5 = vector.load %arg7[%c0_9, %c0_10] : memref<1x128xf32, #tpu.memory_space<vmem>>, vector<1x128xf32>
    %c0_11 = arith.constant 0 : index
    %c0_12 = arith.constant 0 : index
    %6 = vector.load %arg1[%c0_11, %c0_12] : memref<8x128xf32, #tpu.memory_space<vmem>>, vector<8x128xf32>
    %7 = arith.truncf %6 : vector<8x128xf32> to vector<8x128xbf16>
    %cst = arith.constant dense<0.000000e+00> : vector<8x128xf32>
    %8 = tpu.matmul %7, %0, %cst {dimension_numbers = #tpu.dot_dimension_numbers<[1], [0], [0], [1], [0, 0, 1, 1], [], []>} : vector<8x128xbf16>, vector<128x128xbf16>, vector<8x128xf32> -> vector<8x128xf32>
    %9 = vector.broadcast %1 : vector<1x128xf32> to vector<8x128xf32>
    %10 = arith.addf %8, %9 : vector<8x128xf32>
    %cst_13 = arith.constant 0.000000e+00 : f32
    %11 = vector.broadcast %cst_13 : f32 to vector<8x128xf32>
    %12 = arith.cmpf oge, %10, %11 : vector<8x128xf32>
    %cst_14 = arith.constant 0.00999999977 : f32
    %13 = vector.broadcast %cst_14 : f32 to vector<8x128xf32>
    %14 = arith.mulf %13, %10 : vector<8x128xf32>
    %15 = arith.select %12, %10, %14 : vector<8x128xi1>, vector<8x128xf32>
    %16 = arith.truncf %15 : vector<8x128xf32> to vector<8x128xbf16>
    %cst_15 = arith.constant dense<0.000000e+00> : vector<8x128xf32>
    %17 = tpu.matmul %16, %2, %cst_15 {dimension_numbers = #tpu.dot_dimension_numbers<[1], [0], [0], [1], [0, 0, 1, 1], [], []>} : vector<8x128xbf16>, vector<128x128xbf16>, vector<8x128xf32> -> vector<8x128xf32>
    %18 = vector.broadcast %3 : vector<1x128xf32> to vector<8x128xf32>
    %19 = arith.addf %17, %18 : vector<8x128xf32>
    %cst_16 = arith.constant 0.000000e+00 : f32
    %20 = vector.broadcast %cst_16 : f32 to vector<8x128xf32>
    %21 = arith.cmpf oge, %19, %20 : vector<8x128xf32>
    %cst_17 = arith.constant 0.00999999977 : f32
    %22 = vector.broadcast %cst_17 : f32 to vector<8x128xf32>
    %23 = arith.mulf %22, %19 : vector<8x128xf32>
    %24 = arith.select %21, %19, %23 : vector<8x128xi1>, vector<8x128xf32>
    %25 = arith.truncf %24 : vector<8x128xf32> to vector<8x128xbf16>
    %cst_18 = arith.constant dense<0.000000e+00> : vector<8x128xf32>
    %26 = tpu.matmul %25, %4, %cst_18 {dimension_numbers = #tpu.dot_dimension_numbers<[1], [0], [0], [1], [0, 0, 1, 1], [], []>} : vector<8x128xbf16>, vector<128x128xbf16>, vector<8x128xf32> -> vector<8x128xf32>
    %27 = vector.broadcast %5 : vector<1x128xf32> to vector<8x128xf32>
    %28 = arith.addf %26, %27 : vector<8x128xf32>
    %cst_19 = arith.constant 0.000000e+00 : f32
    %29 = vector.broadcast %cst_19 : f32 to vector<8x128xf32>
    %30 = arith.cmpf oge, %28, %29 : vector<8x128xf32>
    %cst_20 = arith.constant 0.00999999977 : f32
    %31 = vector.broadcast %cst_20 : f32 to vector<8x128xf32>
    %32 = arith.mulf %31, %28 : vector<8x128xf32>
    %33 = arith.select %30, %28, %32 : vector<8x128xi1>, vector<8x128xf32>
    %34 = arith.truncf %33 : vector<8x128xf32> to vector<8x128xbf16>
    %c0_21 = arith.constant 0 : index
    %c0_22 = arith.constant 0 : index
    %35 = vector.load %arg8[%c0_21, %c0_22] : memref<8x128xbf16, #tpu.memory_space<vmem>>, vector<8x128xbf16>
    tpu.vector_store %arg8[%c0_21, %c0_22], %34 {strides = array<i32>} : memref<8x128xbf16, #tpu.memory_space<vmem>>, vector<8x128xbf16>,
    return
  }
  func.func @transform_0(%arg0: i32) -> (i32, i32) {
    %c0_i32 = arith.constant 0 : i32
    %c0_i32_0 = arith.constant 0 : i32
    return %arg0, %c0_i32 : i32, i32
  }
  func.func @transform_1(%arg0: i32) -> (i32, i32) {
    %c0_i32 = arith.constant 0 : i32
    %c0_i32_0 = arith.constant 0 : i32
    %c0_i32_1 = arith.constant 0 : i32
    return %c0_i32, %c0_i32_0 : i32, i32
  }
  func.func @transform_2(%arg0: i32) -> (i32, i32) {
    %c0_i32 = arith.constant 0 : i32
    %c0_i32_0 = arith.constant 0 : i32
    %c0_i32_1 = arith.constant 0 : i32
    return %c0_i32, %c0_i32_0 : i32, i32
  }
  func.func @transform_3(%arg0: i32) -> (i32, i32) {
    %c0_i32 = arith.constant 0 : i32
    %c0_i32_0 = arith.constant 0 : i32
    %c0_i32_1 = arith.constant 0 : i32
    return %c0_i32, %c0_i32_0 : i32, i32
  }
  func.func @transform_4(%arg0: i32) -> (i32, i32) {
    %c0_i32 = arith.constant 0 : i32
    %c0_i32_0 = arith.constant 0 : i32
    %c0_i32_1 = arith.constant 0 : i32
    return %c0_i32, %c0_i32_0 : i32, i32
  }
  func.func @transform_5(%arg0: i32) -> (i32, i32) {
    %c0_i32 = arith.constant 0 : i32
    %c0_i32_0 = arith.constant 0 : i32
    %c0_i32_1 = arith.constant 0 : i32
    return %c0_i32, %c0_i32_0 : i32, i32
  }
  func.func @transform_6(%arg0: i32) -> (i32, i32) {
    %c0_i32 = arith.constant 0 : i32
    %c0_i32_0 = arith.constant 0 : i32
    %c0_i32_1 = arith.constant 0 : i32
    return %c0_i32, %c0_i32_0 : i32, i32
  }
  func.func @transform_7(%arg0: i32) -> (i32, i32) {
    %c0_i32 = arith.constant 0 : i32
    %c0_i32_0 = arith.constant 0 : i32
    return %arg0, %c0_i32 : i32, i32
  }
}

</mosaic_0001>

<llo_original>
// kernel: tpu_custom_call.1
$region0: #{tpu_custom_call.1}
  #allocation0 [shape = 'u32[]', space=smem, size = 0x4, offset = 0x4, fixed_abs, tag = 'smem constant byte address 0x4 - core index']
  #allocation1 [shape = 'u32[144,128]{1,0:T(1,128)}', space=vmem, size = 0x12000, scoped, tag = 'internal scratch']
  %s0 = inlined_call_operand.hbm [shape: f32[8,128], index: 0, kind: input, shape index: {}]
  %s1 = inlined_call_operand.hbm [shape: bf16[128,128], index: 1, kind: input, shape index: {}]
  %s2 = inlined_call_operand.vmem [shape: f32[1,128], index: 2, kind: input, shape index: {}]
  %s3 = inlined_call_operand.hbm [shape: bf16[128,128], index: 3, kind: input, shape index: {}]
  %s4 = inlined_call_operand.vmem [shape: f32[1,128], index: 4, kind: input, shape index: {}]
  %s5 = inlined_call_operand.hbm [shape: bf16[128,128], index: 5, kind: input, shape index: {}]
  %s6 = inlined_call_operand.vmem [shape: f32[1,128], index: 6, kind: input, shape index: {}]
  %s7 = inlined_call_operand.hbm [shape: bf16[8,128], index: 7, kind: output, shape index: {}]
  %s8 = sld [smem:[#allocation0]]
  $region54: #{tpu_custom_call.1} parent=0
    _
  %s10 = ssub.s32 1, %s8
  %s11 = scalar_select 0, %s10, %s8
  $region1: #{tpu_custom_call.1} parent=0
    #allocation2 [shape = 'u8[4096]{0}', space=vmem, size = 0x1000, scoped, tag = 'input window, operand 0, single buffered']
    #allocation3 [shape = 's32[1]{0}', space=sflag, size = 0x4, scoped, tag = 'scoped memory for tpu_custom_call.1']
    #allocation4 [shape = 's32[1]{0}', space=sflag, size = 0x4, scoped, tag = 'scoped memory for tpu_custom_call.1']
    #allocation5 [shape = 'u8[32768]{0}', space=vmem, size = 0x8000, scoped, tag = 'input window, operand 1, single buffered']
    #allocation6 [shape = 's32[1]{0}', space=sflag, size = 0x4, scoped, tag = 'scoped memory for tpu_custom_call.1']
    #allocation7 [shape = 'u8[32768]{0}', space=vmem, size = 0x8000, scoped, tag = 'input window, operand 3, single buffered']
    #allocation8 [shape = 'u8[32768]{0}', space=vmem, size = 0x8000, scoped, tag = 'input window, operand 5, single buffered']
    #allocation9 [shape = 's32[1]{0}', space=sflag, size = 0x4, scoped, tag = 'scoped memory for tpu_custom_call.1']
    #allocation10 [shape = 'u8[2048]{0}', space=vmem, size = 0x800, scoped, tag = 'output window, operand 0, single buffered']
    %12 = vsyncpa [#allocation3], 0
    %13 = vsyncpa [#allocation6], 0
    %14 = vsyncpa [#allocation9], 0
    %15 = vsyncpa [#allocation4], 0
    // Predicated region
    $region2: #{tpu_custom_call.1} parent=1 // pred_check
      _
    $region3: #{tpu_custom_call.1} parent=1 // pred_check_branch
      %17 = sbr.rel (0) target = $region5
    $region4: #{tpu_custom_call.1} parent=1 // pred_region
      %s19 = ssub.s32 128, 128
      %20 = vsyncadd [#allocation3], %s19
      %s22 = sshll.u32 [#allocation2], 4
      %s23 = int_to_ptr.vmem [resolvable:$true] %s22
      %25 = dma.hbm_to_vmem [thread:$0]  %s0, 128, %s23, [#allocation3]
    $region5: #{tpu_custom_call.1} parent=1 // pred_fallthru
      _
    // Predicated region
    $region6: #{tpu_custom_call.1} parent=1 // pred_check
      _
    $region7: #{tpu_custom_call.1} parent=1 // pred_check_branch
      %27 = sbr.rel (0) target = $region9
    $region8: #{tpu_custom_call.1} parent=1 // pred_region
      %s29 = ssub.s32 1024, 1024
      %30 = vsyncadd [#allocation6], %s29
      %s31 = sshll.u32 [#allocation5], 4
      %s32 = int_to_ptr.vmem [resolvable:$true] %s31
      %37 = dma.hbm_to_vmem [thread:$0]  %s1, 1024, %s32, [#allocation6], 64, 64, 4
    $region9: #{tpu_custom_call.1} parent=1 // pred_fallthru
      _
    // Predicated region
    $region10: #{tpu_custom_call.1} parent=1 // pred_check
      _
    $region11: #{tpu_custom_call.1} parent=1 // pred_check_branch
      %39 = sbr.rel (0) target = $region13
    $region12: #{tpu_custom_call.1} parent=1 // pred_region
      _
    $region13: #{tpu_custom_call.1} parent=1 // pred_fallthru
      _
    // Predicated region
    $region14: #{tpu_custom_call.1} parent=1 // pred_check
      _
    $region15: #{tpu_custom_call.1} parent=1 // pred_check_branch
      %41 = sbr.rel (0) target = $region17
    $region16: #{tpu_custom_call.1} parent=1 // pred_region
      %s43 = ssub.s32 1024, 1024
      %44 = vsyncadd [#allocation6], %s43
      %s45 = sshll.u32 [#allocation7], 4
      %s46 = int_to_ptr.vmem [resolvable:$true] %s45
      %51 = dma.hbm_to_vmem [thread:$0]  %s3, 1024, %s46, [#allocation6], 64, 64, 4
    $region17: #{tpu_custom_call.1} parent=1 // pred_fallthru
      _
    // Predicated region
    $region18: #{tpu_custom_call.1} parent=1 // pred_check
      _
    $region19: #{tpu_custom_call.1} parent=1 // pred_check_branch
      %53 = sbr.rel (0) target = $region21
    $region20: #{tpu_custom_call.1} parent=1 // pred_region
      _
    $region21: #{tpu_custom_call.1} parent=1 // pred_fallthru
      _
    // Predicated region
    $region22: #{tpu_custom_call.1} parent=1 // pred_check
      _
    $region23: #{tpu_custom_call.1} parent=1 // pred_check_branch
      %55 = sbr.rel (0) target = $region25
    $region24: #{tpu_custom_call.1} parent=1 // pred_region
      %s57 = ssub.s32 1024, 1024
      %58 = vsyncadd [#allocation9], %s57
      %s59 = sshll.u32 [#allocation8], 4
      %s60 = int_to_ptr.vmem [resolvable:$true] %s59
      %65 = dma.hbm_to_vmem [thread:$0]  %s5, 1024, %s60, [#allocation9], 64, 64, 4
    $region25: #{tpu_custom_call.1} parent=1 // pred_fallthru
      _
    // Predicated region
    $region26: #{tpu_custom_call.1} parent=1 // pred_check
      _
    $region27: #{tpu_custom_call.1} parent=1 // pred_check_branch
      %67 = sbr.rel (0) target = $region29
    $region28: #{tpu_custom_call.1} parent=1 // pred_region
      _
    $region29: #{tpu_custom_call.1} parent=1 // pred_fallthru
      _
    // Predicated region
    $region30: #{tpu_custom_call.1} parent=1 // pred_check
      _
    $region31: #{tpu_custom_call.1} parent=1 // pred_check_branch
      %69 = sbr.rel (0) target = $region33
    $region32: #{tpu_custom_call.1} parent=1 // pred_region
      %70 = dma.done [#allocation3], 128
    $region33: #{tpu_custom_call.1} parent=1 // pred_fallthru
      _
    // Predicated region
    $region34: #{tpu_custom_call.1} parent=1 // pred_check
      _
    $region35: #{tpu_custom_call.1} parent=1 // pred_check_branch
      %72 = sbr.rel (0) target = $region37
    $region36: #{tpu_custom_call.1} parent=1 // pred_region
      %73 = dma.done [#allocation6], 1024
    $region37: #{tpu_custom_call.1} parent=1 // pred_fallthru
      _
    // Predicated region
    $region38: #{tpu_custom_call.1} parent=1 // pred_check
      _
    $region39: #{tpu_custom_call.1} parent=1 // pred_check_branch
      %75 = sbr.rel (0) target = $region41
    $region40: #{tpu_custom_call.1} parent=1 // pred_region
      %76 = dma.done [#allocation6], 1024
    $region41: #{tpu_custom_call.1} parent=1 // pred_fallthru
      _
    // Predicated region
    $region42: #{tpu_custom_call.1} parent=1 // pred_check
      _
    $region43: #{tpu_custom_call.1} parent=1 // pred_check_branch
      %78 = sbr.rel (0) target = $region45
    $region44: #{tpu_custom_call.1} parent=1 // pred_region
      %79 = dma.done [#allocation9], 1024
    $region45: #{tpu_custom_call.1} parent=1 // pred_fallthru
      _
    %v81 = vld [vmem:[#allocation5] sm:$0xf]
    %v82 = vld [vmem:[#allocation5 + $0x4] sm:$0xf]
    %v83 = vld [vmem:[#allocation5 + $0x8] sm:$0xf]
    %v84 = vld [vmem:[#allocation5 + $0xc] sm:$0xf]
    %v85 = vld [vmem:[#allocation5 + $0x10] sm:$0xf]
    %v86 = vld [vmem:[#allocation5 + $0x14] sm:$0xf]
    %v87 = vld [vmem:[#allocation5 + $0x18] sm:$0xf]
    %v88 = vld [vmem:[#allocation5 + $0x1c] sm:$0xf]
    %v89 = vld [vmem:[#allocation5 + $0x20] sm:$0xf]
    %v90 = vld [vmem:[#allocation5 + $0x24] sm:$0xf]
    %v91 = vld [vmem:[#allocation5 + $0x28] sm:$0xf]
    %v92 = vld [vmem:[#allocation5 + $0x2c] sm:$0xf]
    %v93 = vld [vmem:[#allocation5 + $0x30] sm:$0xf]
    %v94 = vld [vmem:[#allocation5 + $0x34] sm:$0xf]
    %v95 = vld [vmem:[#allocation5 + $0x38] sm:$0xf]
    %v96 = vld [vmem:[#allocation5 + $0x3c] sm:$0xf]
    %v97 = vld [vmem:[%s2] sm:$0x1]
    %v98 = vld [vmem:[#allocation7] sm:$0xf]
    %v99 = vld [vmem:[#allocation7 + $0x4] sm:$0xf]
    %v100 = vld [vmem:[#allocation7 + $0x8] sm:$0xf]
    %v101 = vld [vmem:[#allocation7 + $0xc] sm:$0xf]
    %v102 = vld [vmem:[#allocation7 + $0x10] sm:$0xf]
    %v103 = vld [vmem:[#allocation7 + $0x14] sm:$0xf]
    %v104 = vld [vmem:[#allocation7 + $0x18] sm:$0xf]
    %v105 = vld [vmem:[#allocation7 + $0x1c] sm:$0xf]
    %v106 = vld [vmem:[#allocation7 + $0x20] sm:$0xf]
    %v107 = vld [vmem:[#allocation7 + $0x24] sm:$0xf]
    %v108 = vld [vmem:[#allocation7 + $0x28] sm:$0xf]
    %v109 = vld [vmem:[#allocation7 + $0x2c] sm:$0xf]
    %v110 = vld [vmem:[#allocation7 + $0x30] sm:$0xf]
    %v111 = vld [vmem:[#allocation7 + $0x34] sm:$0xf]
    %v112 = vld [vmem:[#allocation7 + $0x38] sm:$0xf]
    %v113 = vld [vmem:[#allocation7 + $0x3c] sm:$0xf]
    %v114 = vld [vmem:[%s4] sm:$0x1]
    %v115 = vld [vmem:[#allocation8] sm:$0xf]
    %v116 = vld [vmem:[#allocation8 + $0x4] sm:$0xf]
    %v117 = vld [vmem:[#allocation8 + $0x8] sm:$0xf]
    %v118 = vld [vmem:[#allocation8 + $0xc] sm:$0xf]
    %v119 = vld [vmem:[#allocation8 + $0x10] sm:$0xf]
    %v120 = vld [vmem:[#allocation8 + $0x14] sm:$0xf]
    %v121 = vld [vmem:[#allocation8 + $0x18] sm:$0xf]
    %v122 = vld [vmem:[#allocation8 + $0x1c] sm:$0xf]
    %v123 = vld [vmem:[#allocation8 + $0x20] sm:$0xf]
    %v124 = vld [vmem:[#allocation8 + $0x24] sm:$0xf]
    %v125 = vld [vmem:[#allocation8 + $0x28] sm:$0xf]
    %v126 = vld [vmem:[#allocation8 + $0x2c] sm:$0xf]
    %v127 = vld [vmem:[#allocation8 + $0x30] sm:$0xf]
    %v128 = vld [vmem:[#allocation8 + $0x34] sm:$0xf]
    %v129 = vld [vmem:[#allocation8 + $0x38] sm:$0xf]
    %v130 = vld [vmem:[#allocation8 + $0x3c] sm:$0xf]
    %v131 = vld [vmem:[%s6] sm:$0x1]
    %v132 = vld [vmem:[#allocation2] sm:$0xff]
    %v133 = vpack.c.bf16 %v132, %v132
    %v135 = vlaneseq
    %v136 = vshrl.u32 %v135, 7
    %v137 = vsub.s32 0, %v136
    %v138 = vrot.slane %v97, %v137
    %v156 = vunpack.c.l.b16 %v81
    %v157 = vunpack.c.l.b16 %v82
    %v158 = vunpack.c.l.b16 %v83
    %v159 = vunpack.c.l.b16 %v84
    %v160 = vunpack.c.l.b16 %v85
    %v161 = vunpack.c.l.b16 %v86
    %v162 = vunpack.c.l.b16 %v87
    %v163 = vunpack.c.l.b16 %v88
    %v164 = vunpack.c.l.b16 %v89
    %v165 = vunpack.c.l.b16 %v90
    %v166 = vunpack.c.l.b16 %v91
    %v167 = vunpack.c.l.b16 %v92
    %v168 = vunpack.c.l.b16 %v93
    %v169 = vunpack.c.l.b16 %v94
    %v170 = vunpack.c.l.b16 %v95
    %v171 = vunpack.c.l.b16 %v96
    %v172 = vpack.c.b16 %v157, %v156
    %v173 = vpack.c.b16 %v159, %v158
    %v174 = vpack.c.b16 %v161, %v160
    %v175 = vpack.c.b16 %v163, %v162
    %v176 = vpack.c.b16 %v165, %v164
    %v177 = vpack.c.b16 %v167, %v166
    %v178 = vpack.c.b16 %v169, %v168
    %v179 = vpack.c.b16 %v171, %v170
    %188 = vmatprep.subr.bf16.mxu0 0
    %189 = vmatpush1.bf16.msra.mxu0 %v172
    %190 = vmatprep.subr.bf16.mxu0 0
    %191 = vmatpush1.bf16.msra.mxu0 %v173
    %192 = vmatprep.subr.bf16.mxu0 0
    %193 = vmatpush1.bf16.msra.mxu0 %v174
    %194 = vmatprep.subr.bf16.mxu0 0
    %195 = vmatpush1.bf16.msra.mxu0 %v175
    %196 = vmatprep.subr.bf16.mxu0 0
    %197 = vmatpush1.bf16.msra.mxu0 %v176
    %198 = vmatprep.subr.bf16.mxu0 0
    %199 = vmatpush1.bf16.msra.mxu0 %v177
    %200 = vmatprep.subr.bf16.mxu0 0
    %201 = vmatpush1.bf16.msra.mxu0 %v178
    %202 = vmatprep.subr.bf16.mxu0 0
    %203 = vmatpush1.bf16.msra.mxu0 %v179
    %204 = vmatprep.subr.bf16.mxu0 0
    %205 = vmatpush1.bf16.msra.mxu0 0
    %206 = vmatprep.subr.bf16.mxu0 0
    %207 = vmatpush1.bf16.msra.mxu0 0
    %208 = vmatprep.subr.bf16.mxu0 0
    %209 = vmatpush1.bf16.msra.mxu0 0
    %210 = vmatprep.subr.bf16.mxu0 0
    %211 = vmatpush1.bf16.msra.mxu0 0
    %212 = vmatprep.subr.bf16.mxu0 0
    %213 = vmatpush1.bf16.msra.mxu0 0
    %214 = vmatprep.subr.bf16.mxu0 0
    %215 = vmatpush1.bf16.msra.mxu0 0
    %216 = vmatprep.subr.bf16.mxu0 0
    %217 = vmatpush1.bf16.msra.mxu0 0
    %218 = vmatprep.subr.bf16.mxu0 0
    %219 = vmatpush1.bf16.msra.mxu0 0
    %220 = vmatprep.mubr.bf16.mxu0 0
    %221 = vmatmul.mubr.bf16.gmra.mrb[0].mxu0 %v133
    %v222 = vpop.f32.mrb[0].mxu0
    %v223 = vadd.f32 %v138, %v222
    %v224 = vpop.f32.mrb[0].mxu0
    %v225 = vpop.f32.mrb[0].mxu0
    %v226 = vpop.f32.mrb[0].mxu0
    %227 = vdwg.mxu0
    %vm228 = vcmp.ge.f32.partialorder %v223, 0.0
    %v229 = vmul.f32 %v223, 0.01
    %v230 = vsel %vm228, %v223, %v229
    %v231 = vpack.c.bf16 %v230, %v230
    %v233 = vlaneseq
    %v234 = vshrl.u32 %v233, 7
    %v235 = vsub.s32 0, %v234
    %v236 = vrot.slane %v114, %v235
    %v254 = vunpack.c.l.b16 %v98
    %v255 = vunpack.c.l.b16 %v99
    %v256 = vunpack.c.l.b16 %v100
    %v257 = vunpack.c.l.b16 %v101
    %v258 = vunpack.c.l.b16 %v102
    %v259 = vunpack.c.l.b16 %v103
    %v260 = vunpack.c.l.b16 %v104
    %v261 = vunpack.c.l.b16 %v105
    %v262 = vunpack.c.l.b16 %v106
    %v263 = vunpack.c.l.b16 %v107
    %v264 = vunpack.c.l.b16 %v108
    %v265 = vunpack.c.l.b16 %v109
    %v266 = vunpack.c.l.b16 %v110
    %v267 = vunpack.c.l.b16 %v111
    %v268 = vunpack.c.l.b16 %v112
    %v269 = vunpack.c.l.b16 %v113
    %v270 = vpack.c.b16 %v255, %v254
    %v271 = vpack.c.b16 %v257, %v256
    %v272 = vpack.c.b16 %v259, %v258
    %v273 = vpack.c.b16 %v261, %v260
    %v274 = vpack.c.b16 %v263, %v262
    %v275 = vpack.c.b16 %v265, %v264
    %v276 = vpack.c.b16 %v267, %v266
    %v277 = vpack.c.b16 %v269, %v268
    %286 = vmatprep.subr.bf16.mxu0 0
    %287 = vmatpush1.bf16.msra.mxu0 %v270
    %288 = vmatprep.subr.bf16.mxu0 0
    %289 = vmatpush1.bf16.msra.mxu0 %v271
    %290 = vmatprep.subr.bf16.mxu0 0
    %291 = vmatpush1.bf16.msra.mxu0 %v272
    %292 = vmatprep.subr.bf16.mxu0 0
    %293 = vmatpush1.bf16.msra.mxu0 %v273
    %294 = vmatprep.subr.bf16.mxu0 0
    %295 = vmatpush1.bf16.msra.mxu0 %v274
    %296 = vmatprep.subr.bf16.mxu0 0
    %297 = vmatpush1.bf16.msra.mxu0 %v275
    %298 = vmatprep.subr.bf16.mxu0 0
    %299 = vmatpush1.bf16.msra.mxu0 %v276
    %300 = vmatprep.subr.bf16.mxu0 0
    %301 = vmatpush1.bf16.msra.mxu0 %v277
    %302 = vmatprep.subr.bf16.mxu0 0
    %303 = vmatpush1.bf16.msra.mxu0 0
    %304 = vmatprep.subr.bf16.mxu0 0
    %305 = vmatpush1.bf16.msra.mxu0 0
    %306 = vmatprep.subr.bf16.mxu0 0
    %307 = vmatpush1.bf16.msra.mxu0 0
    %308 = vmatprep.subr.bf16.mxu0 0
    %309 = vmatpush1.bf16.msra.mxu0 0
    %310 = vmatprep.subr.bf16.mxu0 0
    %311 = vmatpush1.bf16.msra.mxu0 0
    %312 = vmatprep.subr.bf16.mxu0 0
    %313 = vmatpush1.bf16.msra.mxu0 0
    %314 = vmatprep.subr.bf16.mxu0 0
    %315 = vmatpush1.bf16.msra.mxu0 0
    %316 = vmatprep.subr.bf16.mxu0 0
    %317 = vmatpush1.bf16.msra.mxu0 0
    %318 = vmatprep.mubr.bf16.mxu0 0
    %319 = vmatmul.mubr.bf16.gmra.mrb[0].mxu0 %v231
    %v320 = vpop.f32.mrb[0].mxu0
    %v321 = vadd.f32 %v236, %v320
    %v322 = vpop.f32.mrb[0].mxu0
    %v323 = vpop.f32.mrb[0].mxu0
    %v324 = vpop.f32.mrb[0].mxu0
    %325 = vdwg.mxu0
    %vm326 = vcmp.ge.f32.partialorder %v321, 0.0
    %v327 = vmul.f32 %v321, 0.01
    %v328 = vsel %vm326, %v321, %v327
    %v329 = vpack.c.bf16 %v328, %v328
    %v331 = vlaneseq
    %v332 = vshrl.u32 %v331, 7
    %v333 = vsub.s32 0, %v332
    %v334 = vrot.slane %v131, %v333
    %v352 = vunpack.c.l.b16 %v115
    %v353 = vunpack.c.l.b16 %v116
    %v354 = vunpack.c.l.b16 %v117
    %v355 = vunpack.c.l.b16 %v118
    %v356 = vunpack.c.l.b16 %v119
    %v357 = vunpack.c.l.b16 %v120
    %v358 = vunpack.c.l.b16 %v121
    %v359 = vunpack.c.l.b16 %v122
    %v360 = vunpack.c.l.b16 %v123
    %v361 = vunpack.c.l.b16 %v124
    %v362 = vunpack.c.l.b16 %v125
    %v363 = vunpack.c.l.b16 %v126
    %v364 = vunpack.c.l.b16 %v127
    %v365 = vunpack.c.l.b16 %v128
    %v366 = vunpack.c.l.b16 %v129
    %v367 = vunpack.c.l.b16 %v130
    %v368 = vpack.c.b16 %v353, %v352
    %v369 = vpack.c.b16 %v355, %v354
    %v370 = vpack.c.b16 %v357, %v356
    %v371 = vpack.c.b16 %v359, %v358
    %v372 = vpack.c.b16 %v361, %v360
    %v373 = vpack.c.b16 %v363, %v362
    %v374 = vpack.c.b16 %v365, %v364
    %v375 = vpack.c.b16 %v367, %v366
    %384 = vmatprep.subr.bf16.mxu0 0
    %385 = vmatpush1.bf16.msra.mxu0 %v368
    %386 = vmatprep.subr.bf16.mxu0 0
    %387 = vmatpush1.bf16.msra.mxu0 %v369
    %388 = vmatprep.subr.bf16.mxu0 0
    %389 = vmatpush1.bf16.msra.mxu0 %v370
    %390 = vmatprep.subr.bf16.mxu0 0
    %391 = vmatpush1.bf16.msra.mxu0 %v371
    %392 = vmatprep.subr.bf16.mxu0 0
    %393 = vmatpush1.bf16.msra.mxu0 %v372
    %394 = vmatprep.subr.bf16.mxu0 0
    %395 = vmatpush1.bf16.msra.mxu0 %v373
    %396 = vmatprep.subr.bf16.mxu0 0
    %397 = vmatpush1.bf16.msra.mxu0 %v374
    %398 = vmatprep.subr.bf16.mxu0 0
    %399 = vmatpush1.bf16.msra.mxu0 %v375
    %400 = vmatprep.subr.bf16.mxu0 0
    %401 = vmatpush1.bf16.msra.mxu0 0
    %402 = vmatprep.subr.bf16.mxu0 0
    %403 = vmatpush1.bf16.msra.mxu0 0
    %404 = vmatprep.subr.bf16.mxu0 0
    %405 = vmatpush1.bf16.msra.mxu0 0
    %406 = vmatprep.subr.bf16.mxu0 0
    %407 = vmatpush1.bf16.msra.mxu0 0
    %408 = vmatprep.subr.bf16.mxu0 0
    %409 = vmatpush1.bf16.msra.mxu0 0
    %410 = vmatprep.subr.bf16.mxu0 0
    %411 = vmatpush1.bf16.msra.mxu0 0
    %412 = vmatprep.subr.bf16.mxu0 0
    %413 = vmatpush1.bf16.msra.mxu0 0
    %414 = vmatprep.subr.bf16.mxu0 0
    %415 = vmatpush1.bf16.msra.mxu0 0
    %416 = vmatprep.mubr.bf16.mxu0 0
    %417 = vmatmul.mubr.bf16.gmra.mrb[0].mxu0 %v329
    %v418 = vpop.f32.mrb[0].mxu0
    %v419 = vadd.f32 %v334, %v418
    %v420 = vpop.f32.mrb[0].mxu0
    %v421 = vpop.f32.mrb[0].mxu0
    %v422 = vpop.f32.mrb[0].mxu0
    %423 = vdwg.mxu0
    %vm424 = vcmp.ge.f32.partialorder %v419, 0.0
    %v425 = vmul.f32 %v419, 0.01
    %v426 = vsel %vm424, %v419, %v425
    %v427 = vpack.c.bf16 %v426, %v426
    %428 = vst [vmem:[#allocation10] sm:$0xf] %v427
    // Predicated region
    $region46: #{tpu_custom_call.1} parent=1 // pred_check
      _
    $region47: #{tpu_custom_call.1} parent=1 // pred_check_branch
      %430 = sbr.rel (0) target = $region49
    $region48: #{tpu_custom_call.1} parent=1 // pred_region
      %s432 = ssub.s32 64, 64
      %433 = vsyncadd [#allocation4], %s432
      %s435 = sshll.u32 [#allocation10], 4
      %s436 = int_to_ptr.vmem [resolvable:$true] %s435
      %438 = dma.vmem_to_hbm [thread:$0]  %s436, 64, %s7, [#allocation4]
    $region49: #{tpu_custom_call.1} parent=1 // pred_fallthru
      _
    // Predicated region
    $region50: #{tpu_custom_call.1} parent=1 // pred_check
      _
    $region51: #{tpu_custom_call.1} parent=1 // pred_check_branch
      %440 = sbr.rel (0) target = $region53
    $region52: #{tpu_custom_call.1} parent=1 // pred_region
      %441 = dma.done [#allocation4], 64
    $region53: #{tpu_custom_call.1} parent=1 // pred_fallthru
      _
    %442 = vsyncpa [#allocation3], 1
    %443 = vsyncpa [#allocation6], 1
    %444 = vsyncpa [#allocation9], 1
    %445 = vsyncpa [#allocation4], 1

// kernel: tpu_custom_call.1
$region0: #{tpu_custom_call.1}
  #allocation0 [shape = 'u32[]', space=smem, size = 0x4, offset = 0x4, fixed_abs, tag = 'smem constant byte address 0x4 - core index']
  #allocation1 [shape = 'u32[144,128]{1,0:T(1,128)}', space=vmem, size = 0x12000, scoped, tag = 'internal scratch']
  %s0 = inlined_call_operand.hbm [shape: f32[8,128], index: 0, kind: input, shape index: {}]
  %s1 = inlined_call_operand.hbm [shape: bf16[128,128], index: 1, kind: input, shape index: {}]
  %s2 = inlined_call_operand.vmem [shape: f32[1,128], index: 2, kind: input, shape index: {}]
  %s3 = inlined_call_operand.hbm [shape: bf16[128,128], index: 3, kind: input, shape index: {}]
  %s4 = inlined_call_operand.vmem [shape: f32[1,128], index: 4, kind: input, shape index: {}]
  %s5 = inlined_call_operand.hbm [shape: bf16[128,128], index: 5, kind: input, shape index: {}]
  %s6 = inlined_call_operand.vmem [shape: f32[1,128], index: 6, kind: input, shape index: {}]
  %s7 = inlined_call_operand.hbm [shape: bf16[8,128], index: 7, kind: output, shape index: {}]
  %s8 = sld [smem:[#allocation0]]
  $region54: #{tpu_custom_call.1} parent=0
    _
  %s10 = ssub.s32 1, %s8
  %s11 = scalar_select 0, %s10, %s8
  $region1: #{tpu_custom_call.1} parent=0
    #allocation2 [shape = 'u8[4096]{0}', space=vmem, size = 0x1000, scoped, tag = 'input window, operand 0, single buffered']
    #allocation3 [shape = 's32[1]{0}', space=sflag, size = 0x4, scoped, tag = 'scoped memory for tpu_custom_call.1']
    #allocation4 [shape = 's32[1]{0}', space=sflag, size = 0x4, scoped, tag = 'scoped memory for tpu_custom_call.1']
    #allocation5 [shape = 'u8[32768]{0}', space=vmem, size = 0x8000, scoped, tag = 'input window, operand 1, single buffered']
    #allocation6 [shape = 's32[1]{0}', space=sflag, size = 0x4, scoped, tag = 'scoped memory for tpu_custom_call.1']
    #allocation7 [shape = 'u8[32768]{0}', space=vmem, size = 0x8000, scoped, tag = 'input window, operand 3, single buffered']
    #allocation8 [shape = 'u8[32768]{0}', space=vmem, size = 0x8000, scoped, tag = 'input window, operand 5, single buffered']
    #allocation9 [shape = 's32[1]{0}', space=sflag, size = 0x4, scoped, tag = 'scoped memory for tpu_custom_call.1']
    #allocation10 [shape = 'u8[2048]{0}', space=vmem, size = 0x800, scoped, tag = 'output window, operand 0, single buffered']
    %12 = vsyncpa [#allocation3], 0
    %13 = vsyncpa [#allocation6], 0
    %14 = vsyncpa [#allocation9], 0
    %15 = vsyncpa [#allocation4], 0
    // Predicated region
    $region2: #{tpu_custom_call.1} parent=1 // pred_check
      _
    $region3: #{tpu_custom_call.1} parent=1 // pred_check_branch
      %17 = sbr.rel (0) target = $region5
    $region4: #{tpu_custom_call.1} parent=1 // pred_region
      %s19 = ssub.s32 128, 128
      %20 = vsyncadd [#allocation3], %s19
      %s22 = sshll.u32 [#allocation2], 4
      %s23 = int_to_ptr.vmem [resolvable:$true] %s22
      %25 = dma.hbm_to_vmem [thread:$0]  %s0, 128, %s23, [#allocation3]
    $region5: #{tpu_custom_call.1} parent=1 // pred_fallthru
      _
    // Predicated region
    $region6: #{tpu_custom_call.1} parent=1 // pred_check
      _
    $region7: #{tpu_custom_call.1} parent=1 // pred_check_branch
      %27 = sbr.rel (0) target = $region9
    $region8: #{tpu_custom_call.1} parent=1 // pred_region
      %s29 = ssub.s32 1024, 1024
      %30 = vsyncadd [#allocation6], %s29
      %s31 = sshll.u32 [#allocation5], 4
      %s32 = int_to_ptr.vmem [resolvable:$true] %s31
      %37 = dma.hbm_to_vmem [thread:$0]  %s1, 1024, %s32, [#allocation6], 64, 64, 4
    $region9: #{tpu_custom_call.1} parent=1 // pred_fallthru
      _
    // Predicated region
    $region10: #{tpu_custom_call.1} parent=1 // pred_check
      _
    $region11: #{tpu_custom_call.1} parent=1 // pred_check_branch
      %39 = sbr.rel (0) target = $region13
    $region12: #{tpu_custom_call.1} parent=1 // pred_region
      _
    $region13: #{tpu_custom_call.1} parent=1 // pred_fallthru
      _
    // Predicated region
    $region14: #{tpu_custom_call.1} parent=1 // pred_check
      _
    $region15: #{tpu_custom_call.1} parent=1 // pred_check_branch
      %41 = sbr.rel (0) target = $region17
    $region16: #{tpu_custom_call.1} parent=1 // pred_region
      %s43 = ssub.s32 1024, 1024
      %44 = vsyncadd [#allocation6], %s43
      %s45 = sshll.u32 [#allocation7], 4
      %s46 = int_to_ptr.vmem [resolvable:$true] %s45
      %51 = dma.hbm_to_vmem [thread:$0]  %s3, 1024, %s46, [#allocation6], 64, 64, 4
    $region17: #{tpu_custom_call.1} parent=1 // pred_fallthru
      _
    // Predicated region
    $region18: #{tpu_custom_call.1} parent=1 // pred_check
      _
    $region19: #{tpu_custom_call.1} parent=1 // pred_check_branch
      %53 = sbr.rel (0) target = $region21
    $region20: #{tpu_custom_call.1} parent=1 // pred_region
      _
    $region21: #{tpu_custom_call.1} parent=1 // pred_fallthru
      _
    // Predicated region
    $region22: #{tpu_custom_call.1} parent=1 // pred_check
      _
    $region23: #{tpu_custom_call.1} parent=1 // pred_check_branch
      %55 = sbr.rel (0) target = $region25
    $region24: #{tpu_custom_call.1} parent=1 // pred_region
      %s57 = ssub.s32 1024, 1024
      %58 = vsyncadd [#allocation9], %s57
      %s59 = sshll.u32 [#allocation8], 4
      %s60 = int_to_ptr.vmem [resolvable:$true] %s59
      %65 = dma.hbm_to_vmem [thread:$0]  %s5, 1024, %s60, [#allocation9], 64, 64, 4
    $region25: #{tpu_custom_call.1} parent=1 // pred_fallthru
      _
    // Predicated region
    $region26: #{tpu_custom_call.1} parent=1 // pred_check
      _
    $region27: #{tpu_custom_call.1} parent=1 // pred_check_branch
      %67 = sbr.rel (0) target = $region29
    $region28: #{tpu_custom_call.1} parent=1 // pred_region
      _
    $region29: #{tpu_custom_call.1} parent=1 // pred_fallthru
      _
    // Predicated region
    $region30: #{tpu_custom_call.1} parent=1 // pred_check
      _
    $region31: #{tpu_custom_call.1} parent=1 // pred_check_branch
      %69 = sbr.rel (0) target = $region33
    $region32: #{tpu_custom_call.1} parent=1 // pred_region
      %70 = dma.done [#allocation3], 128
    $region33: #{tpu_custom_call.1} parent=1 // pred_fallthru
      _
    // Predicated region
    $region34: #{tpu_custom_call.1} parent=1 // pred_check
      _
    $region35: #{tpu_custom_call.1} parent=1 // pred_check_branch
      %72 = sbr.rel (0) target = $region37
    $region36: #{tpu_custom_call.1} parent=1 // pred_region
      %73 = dma.done [#allocation6], 1024
    $region37: #{tpu_custom_call.1} parent=1 // pred_fallthru
      _
    // Predicated region
    $region38: #{tpu_custom_call.1} parent=1 // pred_check
      _
    $region39: #{tpu_custom_call.1} parent=1 // pred_check_branch
      %75 = sbr.rel (0) target = $region41
    $region40: #{tpu_custom_call.1} parent=1 // pred_region
      %76 = dma.done [#allocation6], 1024
    $region41: #{tpu_custom_call.1} parent=1 // pred_fallthru
      _
    // Predicated region
    $region42: #{tpu_custom_call.1} parent=1 // pred_check
      _
    $region43: #{tpu_custom_call.1} parent=1 // pred_check_branch
      %78 = sbr.rel (0) target = $region45
    $region44: #{tpu_custom_call.1} parent=1 // pred_region
      %79 = dma.done [#allocation9], 1024
    $region45: #{tpu_custom_call.1} parent=1 // pred_fallthru
      _
    %v81 = vld [vmem:[#allocation5] sm:$0xf]
    %v82 = vld [vmem:[#allocation5 + $0x4] sm:$0xf]
    %v83 = vld [vmem:[#allocation5 + $0x8] sm:$0xf]
    %v84 = vld [vmem:[#allocation5 + $0xc] sm:$0xf]
    %v85 = vld [vmem:[#allocation5 + $0x10] sm:$0xf]
    %v86 = vld [vmem:[#allocation5 + $0x14] sm:$0xf]
    %v87 = vld [vmem:[#allocation5 + $0x18] sm:$0xf]
    %v88 = vld [vmem:[#allocation5 + $0x1c] sm:$0xf]
    %v89 = vld [vmem:[#allocation5 + $0x20] sm:$0xf]
    %v90 = vld [vmem:[#allocation5 + $0x24] sm:$0xf]
    %v91 = vld [vmem:[#allocation5 + $0x28] sm:$0xf]
    %v92 = vld [vmem:[#allocation5 + $0x2c] sm:$0xf]
    %v93 = vld [vmem:[#allocation5 + $0x30] sm:$0xf]
    %v94 = vld [vmem:[#allocation5 + $0x34] sm:$0xf]
    %v95 = vld [vmem:[#allocation5 + $0x38] sm:$0xf]
    %v96 = vld [vmem:[#allocation5 + $0x3c] sm:$0xf]
    %v97 = vld [vmem:[%s2] sm:$0x1]
    %v98 = vld [vmem:[#allocation7] sm:$0xf]
    %v99 = vld [vmem:[#allocation7 + $0x4] sm:$0xf]
    %v100 = vld [vmem:[#allocation7 + $0x8] sm:$0xf]
    %v101 = vld [vmem:[#allocation7 + $0xc] sm:$0xf]
    %v102 = vld [vmem:[#allocation7 + $0x10] sm:$0xf]
    %v103 = vld [vmem:[#allocation7 + $0x14] sm:$0xf]
    %v104 = vld [vmem:[#allocation7 + $0x18] sm:$0xf]
    %v105 = vld [vmem:[#allocation7 + $0x1c] sm:$0xf]
    %v106 = vld [vmem:[#allocation7 + $0x20] sm:$0xf]
    %v107 = vld [vmem:[#allocation7 + $0x24] sm:$0xf]
    %v108 = vld [vmem:[#allocation7 + $0x28] sm:$0xf]
    %v109 = vld [vmem:[#allocation7 + $0x2c] sm:$0xf]
    %v110 = vld [vmem:[#allocation7 + $0x30] sm:$0xf]
    %v111 = vld [vmem:[#allocation7 + $0x34] sm:$0xf]
    %v112 = vld [vmem:[#allocation7 + $0x38] sm:$0xf]
    %v113 = vld [vmem:[#allocation7 + $0x3c] sm:$0xf]
    %v114 = vld [vmem:[%s4] sm:$0x1]
    %v115 = vld [vmem:[#allocation8] sm:$0xf]
    %v116 = vld [vmem:[#allocation8 + $0x4] sm:$0xf]
    %v117 = vld [vmem:[#allocation8 + $0x8] sm:$0xf]
    %v118 = vld [vmem:[#allocation8 + $0xc] sm:$0xf]
    %v119 = vld [vmem:[#allocation8 + $0x10] sm:$0xf]
    %v120 = vld [vmem:[#allocation8 + $0x14] sm:$0xf]
    %v121 = vld [vmem:[#allocation8 + $0x18] sm:$0xf]
    %v122 = vld [vmem:[#allocation8 + $0x1c] sm:$0xf]
    %v123 = vld [vmem:[#allocation8 + $0x20] sm:$0xf]
    %v124 = vld [vmem:[#allocation8 + $0x24] sm:$0xf]
    %v125 = vld [vmem:[#allocation8 + $0x28] sm:$0xf]
    %v126 = vld [vmem:[#allocation8 + $0x2c] sm:$0xf]
    %v127 = vld [vmem:[#allocation8 + $0x30] sm:$0xf]
    %v128 = vld [vmem:[#allocation8 + $0x34] sm:$0xf]
    %v129 = vld [vmem:[#allocation8 + $0x38] sm:$0xf]
    %v130 = vld [vmem:[#allocation8 + $0x3c] sm:$0xf]
    %v131 = vld [vmem:[%s6] sm:$0x1]
    %v132 = vld [vmem:[#allocation2] sm:$0xff]
    %v133 = vpack.c.bf16 %v132, %v132
    %v135 = vlaneseq
    %v136 = vshrl.u32 %v135, 7
    %v137 = vsub.s32 0, %v136
    %v138 = vrot.slane %v97, %v137
    %v156 = vunpack.c.l.b16 %v81
    %v157 = vunpack.c.l.b16 %v82
    %v158 = vunpack.c.l.b16 %v83
    %v159 = vunpack.c.l.b16 %v84
    %v160 = vunpack.c.l.b16 %v85
    %v161 = vunpack.c.l.b16 %v86
    %v162 = vunpack.c.l.b16 %v87
    %v163 = vunpack.c.l.b16 %v88
    %v164 = vunpack.c.l.b16 %v89
    %v165 = vunpack.c.l.b16 %v90
    %v166 = vunpack.c.l.b16 %v91
    %v167 = vunpack.c.l.b16 %v92
    %v168 = vunpack.c.l.b16 %v93
    %v169 = vunpack.c.l.b16 %v94
    %v170 = vunpack.c.l.b16 %v95
    %v171 = vunpack.c.l.b16 %v96
    %v172 = vpack.c.b16 %v157, %v156
    %v173 = vpack.c.b16 %v159, %v158
    %v174 = vpack.c.b16 %v161, %v160
    %v175 = vpack.c.b16 %v163, %v162
    %v176 = vpack.c.b16 %v165, %v164
    %v177 = vpack.c.b16 %v167, %v166
    %v178 = vpack.c.b16 %v169, %v168
    %v179 = vpack.c.b16 %v171, %v170
    %188 = vmatprep.subr.bf16.mxu0 0
    %189 = vmatpush1.bf16.msra.mxu0 %v172
    %190 = vmatprep.subr.bf16.mxu0 0
    %191 = vmatpush1.bf16.msra.mxu0 %v173
    %192 = vmatprep.subr.bf16.mxu0 0
    %193 = vmatpush1.bf16.msra.mxu0 %v174
    %194 = vmatprep.subr.bf16.mxu0 0
    %195 = vmatpush1.bf16.msra.mxu0 %v175
    %196 = vmatprep.subr.bf16.mxu0 0
    %197 = vmatpush1.bf16.msra.mxu0 %v176
    %198 = vmatprep.subr.bf16.mxu0 0
    %199 = vmatpush1.bf16.msra.mxu0 %v177
    %200 = vmatprep.subr.bf16.mxu0 0
    %201 = vmatpush1.bf16.msra.mxu0 %v178
    %202 = vmatprep.subr.bf16.mxu0 0
    %203 = vmatpush1.bf16.msra.mxu0 %v179
    %204 = vmatprep.subr.bf16.mxu0 0
    %205 = vmatpush1.bf16.msra.mxu0 0
    %206 = vmatprep.subr.bf16.mxu0 0
    %207 = vmatpush1.bf16.msra.mxu0 0
    %208 = vmatprep.subr.bf16.mxu0 0
    %209 = vmatpush1.bf16.msra.mxu0 0
    %210 = vmatprep.subr.bf16.mxu0 0
    %211 = vmatpush1.bf16.msra.mxu0 0
    %212 = vmatprep.subr.bf16.mxu0 0
    %213 = vmatpush1.bf16.msra.mxu0 0
    %214 = vmatprep.subr.bf16.mxu0 0
    %215 = vmatpush1.bf16.msra.mxu0 0
    %216 = vmatprep.subr.bf16.mxu0 0
    %217 = vmatpush1.bf16.msra.mxu0 0
    %218 = vmatprep.subr.bf16.mxu0 0
    %219 = vmatpush1.bf16.msra.mxu0 0
    %220 = vmatprep.mubr.bf16.mxu0 0
    %221 = vmatmul.mubr.bf16.gmra.mrb[0].mxu0 %v133
    %v222 = vpop.f32.mrb[0].mxu0
    %v223 = vadd.f32 %v138, %v222
    %v224 = vpop.f32.mrb[0].mxu0
    %v225 = vpop.f32.mrb[0].mxu0
    %v226 = vpop.f32.mrb[0].mxu0
    %227 = vdwg.mxu0
    %vm228 = vcmp.ge.f32.partialorder %v223, 0.0
    %v229 = vmul.f32 %v223, 0.01
    %v230 = vsel %vm228, %v223, %v229
    %v231 = vpack.c.bf16 %v230, %v230
    %v233 = vlaneseq
    %v234 = vshrl.u32 %v233, 7
    %v235 = vsub.s32 0, %v234
    %v236 = vrot.slane %v114, %v235
    %v254 = vunpack.c.l.b16 %v98
    %v255 = vunpack.c.l.b16 %v99
    %v256 = vunpack.c.l.b16 %v100
    %v257 = vunpack.c.l.b16 %v101
    %v258 = vunpack.c.l.b16 %v102
    %v259 = vunpack.c.l.b16 %v103
    %v260 = vunpack.c.l.b16 %v104
    %v261 = vunpack.c.l.b16 %v105
    %v262 = vunpack.c.l.b16 %v106
    %v263 = vunpack.c.l.b16 %v107
    %v264 = vunpack.c.l.b16 %v108
    %v265 = vunpack.c.l.b16 %v109
    %v266 = vunpack.c.l.b16 %v110
    %v267 = vunpack.c.l.b16 %v111
    %v268 = vunpack.c.l.b16 %v112
    %v269 = vunpack.c.l.b16 %v113
    %v270 = vpack.c.b16 %v255, %v254
    %v271 = vpack.c.b16 %v257, %v256
    %v272 = vpack.c.b16 %v259, %v258
    %v273 = vpack.c.b16 %v261, %v260
    %v274 = vpack.c.b16 %v263, %v262
    %v275 = vpack.c.b16 %v265, %v264
    %v276 = vpack.c.b16 %v267, %v266
    %v277 = vpack.c.b16 %v269, %v268
    %286 = vmatprep.subr.bf16.mxu0 0
    %287 = vmatpush1.bf16.msra.mxu0 %v270
    %288 = vmatprep.subr.bf16.mxu0 0
    %289 = vmatpush1.bf16.msra.mxu0 %v271
    %290 = vmatprep.subr.bf16.mxu0 0
    %291 = vmatpush1.bf16.msra.mxu0 %v272
    %292 = vmatprep.subr.bf16.mxu0 0
    %293 = vmatpush1.bf16.msra.mxu0 %v273
    %294 = vmatprep.subr.bf16.mxu0 0
    %295 = vmatpush1.bf16.msra.mxu0 %v274
    %296 = vmatprep.subr.bf16.mxu0 0
    %297 = vmatpush1.bf16.msra.mxu0 %v275
    %298 = vmatprep.subr.bf16.mxu0 0
    %299 = vmatpush1.bf16.msra.mxu0 %v276
    %300 = vmatprep.subr.bf16.mxu0 0
    %301 = vmatpush1.bf16.msra.mxu0 %v277
    %302 = vmatprep.subr.bf16.mxu0 0
    %303 = vmatpush1.bf16.msra.mxu0 0
    %304 = vmatprep.subr.bf16.mxu0 0
    %305 = vmatpush1.bf16.msra.mxu0 0
    %306 = vmatprep.subr.bf16.mxu0 0
    %307 = vmatpush1.bf16.msra.mxu0 0
    %308 = vmatprep.subr.bf16.mxu0 0
    %309 = vmatpush1.bf16.msra.mxu0 0
    %310 = vmatprep.subr.bf16.mxu0 0
    %311 = vmatpush1.bf16.msra.mxu0 0
    %312 = vmatprep.subr.bf16.mxu0 0
    %313 = vmatpush1.bf16.msra.mxu0 0
    %314 = vmatprep.subr.bf16.mxu0 0
    %315 = vmatpush1.bf16.msra.mxu0 0
    %316 = vmatprep.subr.bf16.mxu0 0
    %317 = vmatpush1.bf16.msra.mxu0 0
    %318 = vmatprep.mubr.bf16.mxu0 0
    %319 = vmatmul.mubr.bf16.gmra.mrb[0].mxu0 %v231
    %v320 = vpop.f32.mrb[0].mxu0
    %v321 = vadd.f32 %v236, %v320
    %v322 = vpop.f32.mrb[0].mxu0
    %v323 = vpop.f32.mrb[0].mxu0
    %v324 = vpop.f32.mrb[0].mxu0
    %325 = vdwg.mxu0
    %vm326 = vcmp.ge.f32.partialorder %v321, 0.0
    %v327 = vmul.f32 %v321, 0.01
    %v328 = vsel %vm326, %v321, %v327
    %v329 = vpack.c.bf16 %v328, %v328
    %v331 = vlaneseq
    %v332 = vshrl.u32 %v331, 7
    %v333 = vsub.s32 0, %v332
    %v334 = vrot.slane %v131, %v333
    %v352 = vunpack.c.l.b16 %v115
    %v353 = vunpack.c.l.b16 %v116
    %v354 = vunpack.c.l.b16 %v117
    %v355 = vunpack.c.l.b16 %v118
    %v356 = vunpack.c.l.b16 %v119
    %v357 = vunpack.c.l.b16 %v120
    %v358 = vunpack.c.l.b16 %v121
    %v359 = vunpack.c.l.b16 %v122
    %v360 = vunpack.c.l.b16 %v123
    %v361 = vunpack.c.l.b16 %v124
    %v362 = vunpack.c.l.b16 %v125
    %v363 = vunpack.c.l.b16 %v126
    %v364 = vunpack.c.l.b16 %v127
    %v365 = vunpack.c.l.b16 %v128
    %v366 = vunpack.c.l.b16 %v129
    %v367 = vunpack.c.l.b16 %v130
    %v368 = vpack.c.b16 %v353, %v352
    %v369 = vpack.c.b16 %v355, %v354
    %v370 = vpack.c.b16 %v357, %v356
    %v371 = vpack.c.b16 %v359, %v358
    %v372 = vpack.c.b16 %v361, %v360
    %v373 = vpack.c.b16 %v363, %v362
    %v374 = vpack.c.b16 %v365, %v364
    %v375 = vpack.c.b16 %v367, %v366
    %384 = vmatprep.subr.bf16.mxu0 0
    %385 = vmatpush1.bf16.msra.mxu0 %v368
    %386 = vmatprep.subr.bf16.mxu0 0
    %387 = vmatpush1.bf16.msra.mxu0 %v369
    %388 = vmatprep.subr.bf16.mxu0 0
    %389 = vmatpush1.bf16.msra.mxu0 %v370
    %390 = vmatprep.subr.bf16.mxu0 0
    %391 = vmatpush1.bf16.msra.mxu0 %v371
    %392 = vmatprep.subr.bf16.mxu0 0
    %393 = vmatpush1.bf16.msra.mxu0 %v372
    %394 = vmatprep.subr.bf16.mxu0 0
    %395 = vmatpush1.bf16.msra.mxu0 %v373
    %396 = vmatprep.subr.bf16.mxu0 0
    %397 = vmatpush1.bf16.msra.mxu0 %v374
    %398 = vmatprep.subr.bf16.mxu0 0
    %399 = vmatpush1.bf16.msra.mxu0 %v375
    %400 = vmatprep.subr.bf16.mxu0 0
    %401 = vmatpush1.bf16.msra.mxu0 0
    %402 = vmatprep.subr.bf16.mxu0 0
    %403 = vmatpush1.bf16.msra.mxu0 0
    %404 = vmatprep.subr.bf16.mxu0 0
    %405 = vmatpush1.bf16.msra.mxu0 0
    %406 = vmatprep.subr.bf16.mxu0 0
    %407 = vmatpush1.bf16.msra.mxu0 0
    %408 = vmatprep.subr.bf16.mxu0 0
    %409 = vmatpush1.bf16.msra.mxu0 0
    %410 = vmatprep.subr.bf16.mxu0 0
    %411 = vmatpush1.bf16.msra.mxu0 0
    %412 = vmatprep.subr.bf16.mxu0 0
    %413 = vmatpush1.bf16.msra.mxu0 0
    %414 = vmatprep.subr.bf16.mxu0 0
    %415 = vmatpush1.bf16.msra.mxu0 0
    %416 = vmatprep.mubr.bf16.mxu0 0
    %417 = vmatmul.mubr.bf16.gmra.mrb[0].mxu0 %v329
    %v418 = vpop.f32.mrb[0].mxu0
    %v419 = vadd.f32 %v334, %v418
    %v420 = vpop.f32.mrb[0].mxu0
    %v421 = vpop.f32.mrb[0].mxu0
    %v422 = vpop.f32.mrb[0].mxu0
    %423 = vdwg.mxu0
    %vm424 = vcmp.ge.f32.partialorder %v419, 0.0
    %v425 = vmul.f32 %v419, 0.01
    %v426 = vsel %vm424, %v419, %v425
    %v427 = vpack.c.bf16 %v426, %v426
    %428 = vst [vmem:[#allocation10] sm:$0xf] %v427
    // Predicated region
    $region46: #{tpu_custom_call.1} parent=1 // pred_check
      _
    $region47: #{tpu_custom_call.1} parent=1 // pred_check_branch
      %430 = sbr.rel (0) target = $region49
    $region48: #{tpu_custom_call.1} parent=1 // pred_region
      %s432 = ssub.s32 64, 64
      %433 = vsyncadd [#allocation4], %s432
      %s435 = sshll.u32 [#allocation10], 4
      %s436 = int_to_ptr.vmem [resolvable:$true] %s435
      %438 = dma.vmem_to_hbm [thread:$0]  %s436, 64, %s7, [#allocation4]
    $region49: #{tpu_custom_call.1} parent=1 // pred_fallthru
      _
    // Predicated region
    $region50: #{tpu_custom_call.1} parent=1 // pred_check
      _
    $region51: #{tpu_custom_call.1} parent=1 // pred_check_branch
      %440 = sbr.rel (0) target = $region53
    $region52: #{tpu_custom_call.1} parent=1 // pred_region
      %441 = dma.done [#allocation4], 64
    $region53: #{tpu_custom_call.1} parent=1 // pred_fallthru
      _
    %442 = vsyncpa [#allocation3], 1
    %443 = vsyncpa [#allocation6], 1
    %444 = vsyncpa [#allocation9], 1
    %445 = vsyncpa [#allocation4], 1

</llo_original>
